<compile_context>
chip_gen: v5e
topology: v5e:2x2
jax: 0.10.0
libtpu: 0.0.40
codegen_flags: <defaults>
</compile_context>

<pallas_src>
import functools

import jax
import jax.numpy as jnp
import numpy as np
from jax import lax
from jax.experimental import pallas as pl
from jax.experimental.pallas import tpu as pltpu


def _round_up(v, m):
    return -(-v // m) * m


# ------------------------------ Pallas kernel ------------------------------ #
def gru_fused_kernel(x_hbm_ref, h0_ref, wih_ref, whh_ref, bih_ref, bhn_ref,
                     hT_ref, y_ref, gi_ref, dma_sem):
    """grid = (batch_block [parallel], layer [arbitrary, innermost]).

    y_ref  : (T*TB, P)  bf16 VMEM scratch; persists across the layer axis and
             carries layer l's output sequence into layer l+1.
    gi_ref : (T*TB, 3P) f32 VMEM scratch for the hoisted input projection.
    """
    b = pl.program_id(0)
    layer = pl.program_id(1)
    TB, P = h0_ref.shape[1], h0_ref.shape[2]
    T = y_ref.shape[0] // TB

    # Layer 0: DMA this batch block of the (bf16) input sequence straight
    # from HBM into the layer-I/O scratch -- x is never duplicated in VMEM.
    @pl.when(layer == 0)
    def _():
        cp = pltpu.make_async_copy(x_hbm_ref.at[b], y_ref, dma_sem)
        cp.start()
        cp.wait()

    w_ih = wih_ref[0]                         # (P, 3P) bf16, gate cols [r|z|n]
    w_hh = whh_ref[0]                         # (P, 3P) bf16
    b_ih = bih_ref[0]                         # (1, 3P) f32 (b_hh r/z folded in)
    b_hn = jnp.broadcast_to(bhn_ref[0], (TB, P))   # hoisted broadcast, f32

    # Hoisted, h-independent input projection for ALL timesteps: one MXU op
    # into explicit VMEM scratch (off the serial h chain; not live in vregs
    # across the whole recurrence).
    gi_ref[...] = jnp.dot(y_ref[...], w_ih,
                          preferred_element_type=jnp.float32) + b_ih

    h0 = h0_ref[0].astype(jnp.float32)        # (TB, P) recurrent carry (f32)

    def step(t, h):
        row = pl.multiple_of(t * TB, TB)
        gi = gi_ref[pl.ds(row, TB), :]                               # (TB, 3P)
        gh = jnp.dot(h.astype(jnp.bfloat16), w_hh,
                     preferred_element_type=jnp.float32)             # (TB, 3P)
        # PyTorch gate order (r, z, n); each slice is a full 128-lane block.
        r = jax.nn.sigmoid(gi[:, 0:P] + gh[:, 0:P])
        z = jax.nn.sigmoid(gi[:, P:2 * P] + gh[:, P:2 * P])
        n = jnp.tanh(gi[:, 2 * P:3 * P] + r * (gh[:, 2 * P:3 * P] + b_hn))
        h = n + z * (h - n)                   # == (1 - z) * n + z * h
        # Becomes the next layer's input at time t (read-before-write: gi for
        # this layer was already materialized into gi_ref above).
        y_ref[pl.ds(row, TB), :] = h.astype(y_ref.dtype)
        return h

    # TODO(synk): for large T, compute gi in time-chunks interleaved with the
    #             recurrence to fill MXU bubbles on the serial h chain.
    h_final = lax.fori_loop(0, T, step, h0, unroll=True)
    hT_ref[0] = h_final                       # single final-hidden write/layer


# ----------------------------- parameter prep ------------------------------ #
def init_gru_params(key, input_dim, hidden_dim, n_layers):
    """PyTorch-layout parameters: (W_ih (3H,Din), W_hh (3H,H), b_ih, b_hh)."""
    k = 1.0 / np.sqrt(hidden_dim)
    params = []
    for layer in range(n_layers):
        d_in = input_dim if layer == 0 else hidden_dim
        key, k1, k2, k3, k4 = jax.random.split(key, 5)
        w_ih = jax.random.uniform(k1, (3 * hidden_dim, d_in), jnp.float32, -k, k)
        w_hh = jax.random.uniform(k2, (3 * hidden_dim, hidden_dim), jnp.float32, -k, k)
        b_ih = jax.random.uniform(k3, (3 * hidden_dim,), jnp.float32, -k, k)
        b_hh = jax.random.uniform(k4, (3 * hidden_dim,), jnp.float32, -k, k)
        params.append((w_ih, w_hh, b_ih, b_hh))
    return params


def _pad_weight_t(w_t, d_in, H, P):
    """(d_in, 3H) gate-concatenated weight -> (P, 3P), each gate lane-aligned."""
    out = np.zeros((P, 3 * P), np.float32)
    for g in range(3):
        out[:d_in, g * P:g * P + H] = w_t[:, g * H:(g + 1) * H]
    return out


def _pad_bias(b, H, P):
    out = np.zeros((1, 3 * P), np.float32)
    for g in range(3):
        out[0, g * P:g * P + H] = b[g * H:(g + 1) * H]
    return out


def pack_params(params, input_dim, hidden_dim, n_layers):
    """Stack + lane-pad all layer parameters for the fused kernel (bf16 weights)."""
    H = hidden_dim
    P = _round_up(max(input_dim, hidden_dim), 128)
    wih, whh, bih, bhn = [], [], [], []
    for layer in range(n_layers):
        w_ih, w_hh, b_ih, b_hh = [np.asarray(p, np.float32) for p in params[layer]]
        d_in = input_dim if layer == 0 else hidden_dim
        wih.append(_pad_weight_t(w_ih.T, d_in, H, P))      # (P, 3P)
        whh.append(_pad_weight_t(w_hh.T, H, H, P))         # (P, 3P)
        # r/z hidden biases add linearly with the input bias -> fold offline.
        b_comb = b_ih.copy()
        b_comb[:2 * H] += b_hh[:2 * H]
        bih.append(_pad_bias(b_comb, H, P))                # (1, 3P)
        bn = np.zeros((1, P), np.float32)
        bn[0, :H] = b_hh[2 * H:3 * H]                      # n-gate hidden bias
        bhn.append(bn)
    return (jnp.asarray(np.stack(wih), jnp.bfloat16),
            jnp.asarray(np.stack(whh), jnp.bfloat16),
            jnp.asarray(np.stack(bih), jnp.float32),
            jnp.asarray(np.stack(bhn), jnp.float32))


# --------------------------------- forward --------------------------------- #
@functools.partial(jax.jit, static_argnames=("input_dim", "hidden_dim",
                                             "n_layers", "batch_block"))
def gru_net_forward(x, h, packed, *, input_dim, hidden_dim, n_layers,
                    batch_block=128):
    """Equivalent of GRUNet.forward: returns final hidden h (n_layers, B, H)."""
    wih_all, whh_all, bih_all, bhn_all = packed
    P = wih_all.shape[1]                       # lane-padded feature width
    T = n_layers                               # seq_len == n_layers (per .view)

    x_btd = x.reshape(-1, n_layers, input_dim)         # x.view(-1, T, D)
    B = x_btd.shape[0]

    # Batch padded/blocked to a multiple of 16 (bf16 sublane tile).
    TB = min(_round_up(B, 16), _round_up(batch_block, 16))
    n_bb = -(-_round_up(B, 16) // TB)
    Bp = n_bb * TB

    x_seq = jnp.transpose(x_btd, (1, 0, 2))            # time-major (T, B, D)
    x_pad = jnp.zeros((T, Bp, P), jnp.float32).at[:, :B, :input_dim].set(x_seq)
    # Pre-split by batch block and flatten (T, TB) so the layer-0 DMA and the
    # hoisted gi matmul see one contiguous (T*TB, P) bf16 slab per block.
    x_blk = (x_pad.reshape(T, n_bb, TB, P).transpose(1, 0, 2, 3)
             .reshape(n_bb, T * TB, P).astype(jnp.bfloat16))
    h_pad = jnp.zeros((n_layers, Bp, P), jnp.float32).at[:, :B, :hidden_dim].set(
        h.astype(jnp.float32))

    # Explicit scoped-VMEM budget: scratch + double-buffered operands + margin.
    footprint = (T * TB * P * 2                  # y scratch (bf16)
                 + T * TB * 3 * P * 4            # gi scratch (f32)
                 + 2 * 2 * P * 3 * P * 2         # W_ih/W_hh, 2-deep, bf16
                 + 2 * 2 * 4 * P * 4             # biases, 2-deep, f32
                 + 2 * 2 * TB * P * 4)           # h0/hT blocks, 2-deep, f32
    vmem_limit = int(min(2 * footprint + (8 << 20), 64 << 20))  # v7x phys cap

    hT_pad = pl.pallas_call(
        gru_fused_kernel,
        grid=(n_bb, n_layers),                   # layer axis innermost
        in_specs=[
            pl.BlockSpec(memory_space=pl.ANY),                     # x (HBM)
            pl.BlockSpec((1, TB, P), lambda b, l: (l, b, 0)),      # h0[l, blk]
            pl.BlockSpec((1, P, 3 * P), lambda b, l: (l, 0, 0)),   # W_ih^T[l]
            pl.BlockSpec((1, P, 3 * P), lambda b, l: (l, 0, 0)),   # W_hh^T[l]
            pl.BlockSpec((1, 1, 3 * P), lambda b, l: (l, 0, 0)),   # b_ih[l]
            pl.BlockSpec((1, 1, P), lambda b, l: (l, 0, 0)),       # b_hn[l]
        ],
        out_specs=pl.BlockSpec((1, TB, P), lambda b, l: (l, b, 0)),
        out_shape=jax.ShapeDtypeStruct((n_layers, Bp, P), jnp.float32),
        scratch_shapes=[pltpu.VMEM((T * TB, P), jnp.bfloat16),     # layer I/O
                        pltpu.VMEM((T * TB, 3 * P), jnp.float32),  # gi
                        pltpu.SemaphoreType.DMA],                  # layer-0 DMA
        compiler_params=pltpu.CompilerParams(
            dimension_semantics=("parallel", "arbitrary"),
            vmem_limit_bytes=vmem_limit),
    )(x_blk, h_pad, wih_all, whh_all, bih_all, bhn_all)

    return hT_pad[:, :B, :hidden_dim]


# --------------------------- pure-NumPy reference --------------------------- #
def gru_net_reference(x, h, params, input_dim, hidden_dim, n_layers):
    H = hidden_dim

    def sigmoid(v):
        return 1.0 / (1.0 + np.exp(-v))

    x_btd = np.asarray(x, np.float32).reshape(-1, n_layers, input_dim)
    layer_in = np.transpose(x_btd, (1, 0, 2))          # (T, B, D)
    h_finals = []
    for layer in range(n_layers):
        w_ih, w_hh, b_ih, b_hh = [np.asarray(p, np.float32) for p in params[layer]]
        h_t = np.asarray(h[layer], np.float32)
        outs = []
        for t in range(n_layers):
            gi = layer_in[t] @ w_ih.T + b_ih
            gh = h_t @ w_hh.T + b_hh
            r = sigmoid(gi[:, 0:H] + gh[:, 0:H])
            z = sigmoid(gi[:, H:2 * H] + gh[:, H:2 * H])
            n = np.tanh(gi[:, 2 * H:3 * H] + r * gh[:, 2 * H:3 * H])
            h_t = (1.0 - z) * n + z * h_t
            outs.append(h_t)
        h_finals.append(h_t)
        layer_in = np.stack(outs, axis=0)
    return np.stack(h_finals, axis=0)


# ----------------------------------- main ----------------------------------- #
if __name__ == "__main__":
    input_dim, hidden_dim, n_layers = 16, 32, 2
    batch = 4

    key = jax.random.PRNGKey(0)
    k_x, k_h, k_p = jax.random.split(key, 3)

    # x gets viewed as (-1, n_layers, input_dim) inside forward.
    x = jax.random.normal(k_x, (batch, n_layers * input_dim), jnp.float32)
    h0 = jax.random.normal(k_h, (n_layers, batch, hidden_dim), jnp.float32)

    params = init_gru_params(k_p, input_dim, hidden_dim, n_layers)
    packed = pack_params(params, input_dim, hidden_dim, n_layers)

    h_out = gru_net_forward(x, h0, packed, input_dim=input_dim,
                            hidden_dim=hidden_dim, n_layers=n_layers)
    h_out = jax.block_until_ready(h_out)

    h_ref = gru_net_reference(x, h0, params, input_dim, hidden_dim, n_layers)
    assert h_out.shape == (n_layers, batch, hidden_dim)
    # bf16 MXU operands -> compare against the f32 reference at bf16 tolerance.
    np.testing.assert_allclose(np.asarray(h_out), h_ref, rtol=2e-2, atol=2e-2)

    print("KERNEL_OK")
</pallas_src>

<mosaic_0001>
module attributes {stable_mosaic.version = 11 : i64} {
  func.func @gru_fused_kernel(%arg0: i32, %arg1: i32, %arg2: memref<1x32x128xbf16, #tpu.memory_space<any>>, %arg3: memref<1x16x128xf32, #tpu.memory_space<vmem>>, %arg4: memref<1x128x384xbf16, #tpu.memory_space<vmem>>, %arg5: memref<1x128x384xbf16, #tpu.memory_space<vmem>>, %arg6: memref<1x1x384xf32, #tpu.memory_space<vmem>>, %arg7: memref<1x1x128xf32, #tpu.memory_space<vmem>>, %arg8: memref<1x16x128xf32, #tpu.memory_space<vmem>>, %arg9: memref<32x128xbf16, #tpu.memory_space<vmem>>, %arg10: memref<32x384xf32, #tpu.memory_space<vmem>>, %arg11: memref<!tpu.dma_semaphore, #tpu.memory_space<semaphore_mem>>) attributes {dimension_semantics = [#tpu.dimension_semantics<parallel>, #tpu.dimension_semantics<arbitrary>], iteration_bounds = array<i64: 1, 2>, scalar_prefetch = 0 : i64, scratch_operands = 3 : i64, tpu.core_type = #tpu.core_type<tc>, window_params = [{}, {transform_indices = @transform_1, window_bounds = array<i64: 1, 16, 128>}, {transform_indices = @transform_2, window_bounds = array<i64: 1, 128, 384>}, {transform_indices = @transform_3, window_bounds = array<i64: 1, 128, 384>}, {transform_indices = @transform_4, window_bounds = array<i64: 1, 1, 384>}, {transform_indices = @transform_5, window_bounds = array<i64: 1, 1, 128>}, {transform_indices = @transform_6, window_bounds = array<i64: 1, 16, 128>}]} {
    %c0_i32 = arith.constant 0 : i32
    %0 = arith.cmpi eq, %arg1, %c0_i32 : i32
    %1 = arith.extui %0 : i1 to i32
    %c0_i32_0 = arith.constant 0 : i32
    %2 = arith.cmpi ne, %1, %c0_i32_0 : i32
    scf.if %2 {
      %c0_i32_34 = arith.constant 0 : i32
      %c0_i32_35 = arith.constant 0 : i32
      %91 = tpu.memref_slice %arg2[%arg0, %c0_i32_34, %c0_i32_35] : memref<1x32x128xbf16, #tpu.memory_space<any>> -> memref<1x32x128xbf16, #tpu.memory_space<any>>
      %92 = tpu.memref_squeeze %91 : memref<1x32x128xbf16, #tpu.memory_space<any>> -> memref<32x128xbf16, #tpu.memory_space<any>>
      tpu.enqueue_dma source(%92 : memref<32x128xbf16, #tpu.memory_space<any>>) target(%arg9 : memref<32x128xbf16, #tpu.memory_space<vmem>>) target_semaphore(%arg11 : memref<!tpu.dma_semaphore, #tpu.memory_space<semaphore_mem>>)
      %c0_i32_36 = arith.constant 0 : i32
      %c0_i32_37 = arith.constant 0 : i32
      %93 = tpu.memref_slice %arg2[%arg0, %c0_i32_36, %c0_i32_37] : memref<1x32x128xbf16, #tpu.memory_space<any>> -> memref<1x32x128xbf16, #tpu.memory_space<any>>
      %94 = tpu.memref_squeeze %93 : memref<1x32x128xbf16, #tpu.memory_space<any>> -> memref<32x128xbf16, #tpu.memory_space<any>>
      tpu.wait_dma2 semaphore(%arg11 : memref<!tpu.dma_semaphore, #tpu.memory_space<semaphore_mem>>) src(%94 : memref<32x128xbf16, #tpu.memory_space<any>>) dst(%arg9 : memref<32x128xbf16, #tpu.memory_space<vmem>>)
    } else {
    }
    %c0 = arith.constant 0 : index
    %c0_1 = arith.constant 0 : index
    %c0_2 = arith.constant 0 : index
    %3 = vector.load %arg4[%c0, %c0_1, %c0_2] : memref<1x128x384xbf16, #tpu.memory_space<vmem>>, vector<1x128x384xbf16>
    %4 = vector.shape_cast %3 : vector<1x128x384xbf16> to vector<128x384xbf16>
    %c0_3 = arith.constant 0 : index
    %c0_4 = arith.constant 0 : index
    %c0_5 = arith.constant 0 : index
    %5 = vector.load %arg5[%c0_3, %c0_4, %c0_5] : memref<1x128x384xbf16, #tpu.memory_space<vmem>>, vector<1x128x384xbf16>
    %6 = vector.shape_cast %5 : vector<1x128x384xbf16> to vector<128x384xbf16>
    %c0_6 = arith.constant 0 : index
    %c0_7 = arith.constant 0 : index
    %c0_8 = arith.constant 0 : index
    %7 = vector.load %arg6[%c0_6, %c0_7, %c0_8] : memref<1x1x384xf32, #tpu.memory_space<vmem>>, vector<1x1x384xf32>
    %8 = vector.shape_cast %7 : vector<1x1x384xf32> to vector<1x384xf32>
    %c0_9 = arith.constant 0 : index
    %c0_10 = arith.constant 0 : index
    %c0_11 = arith.constant 0 : index
    %9 = vector.load %arg7[%c0_9, %c0_10, %c0_11] : memref<1x1x128xf32, #tpu.memory_space<vmem>>, vector<1x1x128xf32>
    %10 = vector.shape_cast %9 : vector<1x1x128xf32> to vector<1x128xf32>
    %11 = vector.shape_cast %10 : vector<1x128xf32> to vector<1x128xf32>
    %12 = vector.broadcast %11 : vector<1x128xf32> to vector<16x128xf32>
    %c0_12 = arith.constant 0 : index
    %c0_13 = arith.constant 0 : index
    %13 = vector.load %arg9[%c0_12, %c0_13] : memref<32x128xbf16, #tpu.memory_space<vmem>>, vector<32x128xbf16>
    %cst = arith.constant dense<0.000000e+00> : vector<32x384xf32>
    %14 = tpu.matmul %13, %4, %cst {dimension_numbers = #tpu.dot_dimension_numbers<[1], [0], [0], [1], [0, 0, 1, 1], [], []>} : vector<32x128xbf16>, vector<128x384xbf16>, vector<32x384xf32> -> vector<32x384xf32>
    %15 = vector.broadcast %8 : vector<1x384xf32> to vector<32x384xf32>
    %16 = arith.addf %14, %15 : vector<32x384xf32>
    %c0_14 = arith.constant 0 : index
    %c0_15 = arith.constant 0 : index
    %17 = vector.load %arg10[%c0_14, %c0_15] : memref<32x384xf32, #tpu.memory_space<vmem>>, vector<32x384xf32>
    tpu.vector_store %arg10[%c0_14, %c0_15], %16 {strides = array<i32>} : memref<32x384xf32, #tpu.memory_space<vmem>>, vector<32x384xf32>,
    %c0_16 = arith.constant 0 : index
    %c0_17 = arith.constant 0 : index
    %c0_18 = arith.constant 0 : index
    %18 = vector.load %arg3[%c0_16, %c0_17, %c0_18] : memref<1x16x128xf32, #tpu.memory_space<vmem>>, vector<1x16x128xf32>
    %19 = vector.shape_cast %18 : vector<1x16x128xf32> to vector<16x128xf32>
    %c0_i32_19 = arith.constant 0 : i32
    %c16_i32 = arith.constant 16 : i32
    %20 = arith.muli %c0_i32_19, %c16_i32 : i32
    %21 = tpu.assume_multiple %20, 16 : i32
    %22 = arith.index_cast %21 : i32 to index
    %c0_20 = arith.constant 0 : index
    %23 = vector.load %arg10[%22, %c0_20] : memref<32x384xf32, #tpu.memory_space<vmem>>, vector<16x384xf32>
    %24 = arith.truncf %19 : vector<16x128xf32> to vector<16x128xbf16>
    %cst_21 = arith.constant dense<0.000000e+00> : vector<16x384xf32>
    %25 = tpu.matmul %24, %6, %cst_21 {dimension_numbers = #tpu.dot_dimension_numbers<[1], [0], [0], [1], [0, 0, 1, 1], [], []>} : vector<16x128xbf16>, vector<128x384xbf16>, vector<16x384xf32> -> vector<16x384xf32>
    %26 = vector.extract_strided_slice %23 {offsets = [0, 0], sizes = [16, 128], strides = [1, 1]} : vector<16x384xf32> to vector<16x128xf32>
    %27 = vector.extract_strided_slice %25 {offsets = [0, 0], sizes = [16, 128], strides = [1, 1]} : vector<16x384xf32> to vector<16x128xf32>
    %28 = arith.addf %26, %27 : vector<16x128xf32>
    %29 = arith.negf %28 : vector<16x128xf32>
    %30 = math.exp %29 : vector<16x128xf32>
    %cst_22 = arith.constant 1.000000e+00 : f32
    %31 = vector.broadcast %cst_22 : f32 to vector<16x128xf32>
    %32 = arith.addf %31, %30 : vector<16x128xf32>
    %33 = arith.divf %31, %32 : vector<16x128xf32>
    %34 = vector.extract_strided_slice %23 {offsets = [0, 128], sizes = [16, 128], strides = [1, 1]} : vector<16x384xf32> to vector<16x128xf32>
    %35 = vector.extract_strided_slice %25 {offsets = [0, 128], sizes = [16, 128], strides = [1, 1]} : vector<16x384xf32> to vector<16x128xf32>
    %36 = arith.addf %34, %35 : vector<16x128xf32>
    %37 = arith.negf %36 : vector<16x128xf32>
    %38 = math.exp %37 : vector<16x128xf32>
    %cst_23 = arith.constant 1.000000e+00 : f32
    %39 = vector.broadcast %cst_23 : f32 to vector<16x128xf32>
    %40 = arith.addf %39, %38 : vector<16x128xf32>
    %41 = arith.divf %39, %40 : vector<16x128xf32>
    %42 = vector.extract_strided_slice %23 {offsets = [0, 256], sizes = [16, 128], strides = [1, 1]} : vector<16x384xf32> to vector<16x128xf32>
    %43 = vector.extract_strided_slice %25 {offsets = [0, 256], sizes = [16, 128], strides = [1, 1]} : vector<16x384xf32> to vector<16x128xf32>
    %44 = arith.addf %43, %12 : vector<16x128xf32>
    %45 = arith.mulf %33, %44 : vector<16x128xf32>
    %46 = arith.addf %42, %45 : vector<16x128xf32>
    %47 = math.tanh %46 : vector<16x128xf32>
    %48 = arith.subf %19, %47 : vector<16x128xf32>
    %49 = arith.mulf %41, %48 : vector<16x128xf32>
    %50 = arith.addf %47, %49 : vector<16x128xf32>
    %51 = arith.truncf %50 : vector<16x128xf32> to vector<16x128xbf16>
    %52 = arith.index_cast %21 : i32 to index
    %c0_24 = arith.constant 0 : index
    %53 = vector.load %arg9[%52, %c0_24] : memref<32x128xbf16, #tpu.memory_space<vmem>>, vector<16x128xbf16>
    tpu.vector_store %arg9[%52, %c0_24], %51 {strides = array<i32>} : memref<32x128xbf16, #tpu.memory_space<vmem>>, vector<16x128xbf16>,
    %c1_i32 = arith.constant 1 : i32
    %c16_i32_25 = arith.constant 16 : i32
    %54 = arith.muli %c1_i32, %c16_i32_25 : i32
    %55 = tpu.assume_multiple %54, 16 : i32
    %56 = arith.index_cast %55 : i32 to index
    %c0_26 = arith.constant 0 : index
    %57 = vector.load %arg10[%56, %c0_26] : memref<32x384xf32, #tpu.memory_space<vmem>>, vector<16x384xf32>
    %58 = arith.truncf %50 : vector<16x128xf32> to vector<16x128xbf16>
    %cst_27 = arith.constant dense<0.000000e+00> : vector<16x384xf32>
    %59 = tpu.matmul %58, %6, %cst_27 {dimension_numbers = #tpu.dot_dimension_numbers<[1], [0], [0], [1], [0, 0, 1, 1], [], []>} : vector<16x128xbf16>, vector<128x384xbf16>, vector<16x384xf32> -> vector<16x384xf32>
    %60 = vector.extract_strided_slice %57 {offsets = [0, 0], sizes = [16, 128], strides = [1, 1]} : vector<16x384xf32> to vector<16x128xf32>
    %61 = vector.extract_strided_slice %59 {offsets = [0, 0], sizes = [16, 128], strides = [1, 1]} : vector<16x384xf32> to vector<16x128xf32>
    %62 = arith.addf %60, %61 : vector<16x128xf32>
    %63 = arith.negf %62 : vector<16x128xf32>
    %64 = math.exp %63 : vector<16x128xf32>
    %cst_28 = arith.constant 1.000000e+00 : f32
    %65 = vector.broadcast %cst_28 : f32 to vector<16x128xf32>
    %66 = arith.addf %65, %64 : vector<16x128xf32>
    %67 = arith.divf %65, %66 : vector<16x128xf32>
    %68 = vector.extract_strided_slice %57 {offsets = [0, 128], sizes = [16, 128], strides = [1, 1]} : vector<16x384xf32> to vector<16x128xf32>
    %69 = vector.extract_strided_slice %59 {offsets = [0, 128], sizes = [16, 128], strides = [1, 1]} : vector<16x384xf32> to vector<16x128xf32>
    %70 = arith.addf %68, %69 : vector<16x128xf32>
    %71 = arith.negf %70 : vector<16x128xf32>
    %72 = math.exp %71 : vector<16x128xf32>
    %cst_29 = arith.constant 1.000000e+00 : f32
    %73 = vector.broadcast %cst_29 : f32 to vector<16x128xf32>
    %74 = arith.addf %73, %72 : vector<16x128xf32>
    %75 = arith.divf %73, %74 : vector<16x128xf32>
    %76 = vector.extract_strided_slice %57 {offsets = [0, 256], sizes = [16, 128], strides = [1, 1]} : vector<16x384xf32> to vector<16x128xf32>
    %77 = vector.extract_strided_slice %59 {offsets = [0, 256], sizes = [16, 128], strides = [1, 1]} : vector<16x384xf32> to vector<16x128xf32>
    %78 = arith.addf %77, %12 : vector<16x128xf32>
    %79 = arith.mulf %67, %78 : vector<16x128xf32>
    %80 = arith.addf %76, %79 : vector<16x128xf32>
    %81 = math.tanh %80 : vector<16x128xf32>
    %82 = arith.subf %50, %81 : vector<16x128xf32>
    %83 = arith.mulf %75, %82 : vector<16x128xf32>
    %84 = arith.addf %81, %83 : vector<16x128xf32>
    %85 = arith.truncf %84 : vector<16x128xf32> to vector<16x128xbf16>
    %86 = arith.index_cast %55 : i32 to index
    %c0_30 = arith.constant 0 : index
    %87 = vector.load %arg9[%86, %c0_30] : memref<32x128xbf16, #tpu.memory_space<vmem>>, vector<16x128xbf16>
    tpu.vector_store %arg9[%86, %c0_30], %85 {strides = array<i32>} : memref<32x128xbf16, #tpu.memory_space<vmem>>, vector<16x128xbf16>,
    %c2_i32 = arith.constant 2 : i32
    %c0_31 = arith.constant 0 : index
    %c0_32 = arith.constant 0 : index
    %c0_33 = arith.constant 0 : index
    %88 = vector.load %arg8[%c0_31, %c0_32, %c0_33] : memref<1x16x128xf32, #tpu.memory_space<vmem>>, vector<1x16x128xf32>
    %89 = vector.shape_cast %88 : vector<1x16x128xf32> to vector<16x128xf32>
    %90 = vector.shape_cast %84 : vector<16x128xf32> to vector<1x16x128xf32>
    tpu.vector_store %arg8[%c0_31, %c0_32, %c0_33], %90 {strides = array<i32>} : memref<1x16x128xf32, #tpu.memory_space<vmem>>, vector<1x16x128xf32>,
    return
  }
  func.func @transform_1(%arg0: i32, %arg1: i32) -> (i32, i32, i32) {
    %c0_i32 = arith.constant 0 : i32
    %c0_i32_0 = arith.constant 0 : i32
    return %arg1, %arg0, %c0_i32 : i32, i32, i32
  }
  func.func @transform_2(%arg0: i32, %arg1: i32) -> (i32, i32, i32) {
    %c0_i32 = arith.constant 0 : i32
    %c0_i32_0 = arith.constant 0 : i32
    %c0_i32_1 = arith.constant 0 : i32
    return %arg1, %c0_i32, %c0_i32_0 : i32, i32, i32
  }
  func.func @transform_3(%arg0: i32, %arg1: i32) -> (i32, i32, i32) {
    %c0_i32 = arith.constant 0 : i32
    %c0_i32_0 = arith.constant 0 : i32
    %c0_i32_1 = arith.constant 0 : i32
    return %arg1, %c0_i32, %c0_i32_0 : i32, i32, i32
  }
  func.func @transform_4(%arg0: i32, %arg1: i32) -> (i32, i32, i32) {
    %c0_i32 = arith.constant 0 : i32
    %c0_i32_0 = arith.constant 0 : i32
    %c0_i32_1 = arith.constant 0 : i32
    return %arg1, %c0_i32, %c0_i32_0 : i32, i32, i32
  }
  func.func @transform_5(%arg0: i32, %arg1: i32) -> (i32, i32, i32) {
    %c0_i32 = arith.constant 0 : i32
    %c0_i32_0 = arith.constant 0 : i32
    %c0_i32_1 = arith.constant 0 : i32
    return %arg1, %c0_i32, %c0_i32_0 : i32, i32, i32
  }
  func.func @transform_6(%arg0: i32, %arg1: i32) -> (i32, i32, i32) {
    %c0_i32 = arith.constant 0 : i32
    %c0_i32_0 = arith.constant 0 : i32
    return %arg1, %arg0, %c0_i32 : i32, i32, i32
  }
}

</mosaic_0001>

<llo_original>
// kernel: gru_net_forward.1
$region0: #{gru_net_forward.1}
  #allocation0 [shape = 'u32[]', space=smem, size = 0x4, offset = 0x4, fixed_abs, tag = 'smem constant byte address 0x4 - core index']
  #allocation1 [shape = 'u32[72,128]{1,0:T(1,128)}', space=vmem, size = 0x9000, scoped, tag = 'internal scratch']
  #allocation2 [shape = 'bf16[32,128]{1,0:T(8,128)(2,1)}', space=vmem, size = 0x2000, scoped, tag = 'scratch operand']
  #allocation3 [shape = 'f32[32,384]{1,0:T(8,128)}', space=vmem, size = 0xc000, scoped, tag = 'scratch operand']
  #allocation4 [shape = 's32[1]{0}', space=sflag, size = 0x4, scoped, tag = 'scratch operand']
  #allocation9 [shape = 's32[]', space=sflag, size = 0x4, offset = 0, fixed_abs, tag = 'sflag constant byte address 0x0 - dummy sync flag']
  %s0 = inlined_call_operand.vmem [shape: bf16[1,32,128], index: 0, kind: input, shape index: {}]
  %s1 = inlined_call_operand.vmem [shape: f32[2,16,128], index: 1, kind: input, shape index: {}]
  %s2 = inlined_call_operand.hbm [shape: bf16[2,128,384], index: 2, kind: input, shape index: {}]
  %s3 = inlined_call_operand.hbm [shape: bf16[2,128,384], index: 3, kind: input, shape index: {}]
  %s4 = inlined_call_operand.vmem [shape: f32[2,1,384], index: 4, kind: input, shape index: {}]
  %s5 = inlined_call_operand.vmem [shape: f32[2,1,128], index: 5, kind: input, shape index: {}]
  %s6 = inlined_call_operand.vmem [shape: f32[2,16,128], index: 6, kind: output, shape index: {}]
  %s7 = sld [smem:[#allocation0]]
  $region84: #{gru_net_forward.1} parent=0
    _
  %s9 = ssub.s32 1, %s7
  %s10 = scalar_select 0, %s9, %s7
  $region1: #{gru_net_forward.1} parent=0
    #allocation5 [shape = 'u8[196608]{0}', space=vmem, size = 0x30000, scoped, tag = 'input window, operand 2']
    #allocation6 [shape = 's32[2]{0}', space=sflag, size = 0x8, scoped, tag = 'scoped memory for gru_net_forward.1']
    #allocation7 [shape = 'u8[196608]{0}', space=vmem, size = 0x30000, scoped, tag = 'input window, operand 3']
    #allocation8 [shape = 's32[2]{0}', space=sflag, size = 0x8, scoped, tag = 'scoped memory for gru_net_forward.1']
    %11 = vsyncpa [#allocation6], 0
    %s12 = scalar_lea.sflag [#allocation6], 1
    %13 = vsyncpa %s12, 0
    %14 = vsyncpa [#allocation8], 0
    %s15 = scalar_lea.sflag [#allocation8], 1
    %16 = vsyncpa %s15, 0
    loop: start=0, step=1, limit=4
    $region2: #{gru_net_forward.1} parent=1 // loop_pre_header
      _
    $region3: #{gru_net_forward.1} parent=1 // loop_header
      %s18 = sphi 0, %s22
      %p19 = scmp.ge.s32.totalorder %s18, 4
      %s25 = sphi 0, %s37
      %s26 = sphi 0, %s33
      %s27 = sphi 0, %s25
      %s28 = sphi 0, %s26
      %s29 = sphi 0, %s27
      %s30 = sphi 0, %s28
      %s42 = sphi 0, %s44
      %s45 = sphi 0, %s42
      %s46 = sphi 0, %s45
      %s62 = sphi 0, %s46
      %s68 = sphi 0, %s70
      %s71 = sphi 0, %s68
      %s72 = sphi 0, %s71
      %s88 = sphi 0, %s72
      %s94 = sphi 0, %s96
      %s97 = sphi 0, %s94
      %s98 = sphi 0, %s97
      %s114 = sphi 0, %s98
      %s120 = sphi 0, %s122
      %s123 = sphi 0, %s120
      %s124 = sphi 0, %s123
      %s140 = sphi 0, %s124
      %s146 = sphi 0, %s148
      %s149 = sphi 0, %s146
      %s150 = sphi 0, %s149
      %s166 = sphi 0, %s150
      %s174 = sphi 0, %s176
      %s177 = sphi 0, %s174
      %s178 = sphi 0, %s177
      %s194 = sphi 0, %s178
    $region4: #{gru_net_forward.1} parent=1 // loop_header_branch
      %21 = sbr.rel (%p19) target = $region8
    $region5: #{gru_net_forward.1} parent=1 // loop_body
      %s23 = ssub.s32 %s18, 1
      %s24 = ssub.s32 %s18, 2
      %s31 = sadd.s32 1, %s26
      %p32 = scmp.ge.s32.totalorder %s31, 2
      %s33 = scalar_select %p32, 0, %s31
      %s34 = sadd.s32 1, %s25
      %s35 = scalar_select %p32, %s34, %s25
      %p36 = scmp.ge.s32.totalorder %s35, 1
      %s37 = scalar_select %p36, 0, %s35
      %s38 = ssub.s32 %s26, %s33
      %s39 = ssub.s32 %s25, %s37
      %s40 = sor.u32 %s38, %s39
      %p41 = scmp.eq.s32.totalorder %s40, 0
      %s43 = sadd.s32 %s42, 1
      %s44 = scalar_select %p41, %s42, %s43
      %p47 = pneg %p41
      %p48 = scmp.eq.s32.totalorder %s18, 1
      %p49 = por %p47, %p48
      %p50 = scmp.ne.s32.totalorder %s42, %s45
      %p51 = scmp.eq.s32.totalorder %s18, 0
      %p52 = por %p50, %p51
      %p53 = scmp.ne.s32.totalorder %s42, %s45
      %p54 = scmp.eq.s32.totalorder %s23, 1
      %p55 = por %p53, %p54
      %p56 = scmp.ne.s32.totalorder %s45, %s46
      %p57 = scmp.eq.s32.totalorder %s23, 0
      %p58 = por %p56, %p57
      %p59 = scmp.ne.s32.totalorder %s45, %s46
      %p60 = scmp.eq.s32.totalorder %s24, 1
      %p61 = por %p59, %p60
      %p63 = scmp.ne.s32.totalorder %s46, %s62
      %p64 = scmp.eq.s32.totalorder %s24, 0
      %p65 = por %p63, %p64
      %s66 = ssub.s32 %s26, %s33
      %p67 = scmp.eq.s32.totalorder %s66, 0
      %s69 = sadd.s32 %s68, 1
      %s70 = scalar_select %p67, %s68, %s69
      %p73 = pneg %p67
      %p74 = scmp.eq.s32.totalorder %s18, 1
      %p75 = por %p73, %p74
      %p76 = scmp.ne.s32.totalorder %s68, %s71
      %p77 = scmp.eq.s32.totalorder %s18, 0
      %p78 = por %p76, %p77
      %p79 = scmp.ne.s32.totalorder %s68, %s71
      %p80 = scmp.eq.s32.totalorder %s23, 1
      %p81 = por %p79, %p80
      %p82 = scmp.ne.s32.totalorder %s71, %s72
      %p83 = scmp.eq.s32.totalorder %s23, 0
      %p84 = por %p82, %p83
      %p85 = scmp.ne.s32.totalorder %s71, %s72
      %p86 = scmp.eq.s32.totalorder %s24, 1
      %p87 = por %p85, %p86
      %p89 = scmp.ne.s32.totalorder %s72, %s88
      %p90 = scmp.eq.s32.totalorder %s24, 0
      %p91 = por %p89, %p90
      %s92 = ssub.s32 %s26, %s33
      %p93 = scmp.eq.s32.totalorder %s92, 0
      %s95 = sadd.s32 %s94, 1
      %s96 = scalar_select %p93, %s94, %s95
      %p99 = pneg %p93
      %p100 = scmp.eq.s32.totalorder %s18, 1
      %p101 = por %p99, %p100
      %p102 = scmp.ne.s32.totalorder %s94, %s97
      %p103 = scmp.eq.s32.totalorder %s18, 0
      %p104 = por %p102, %p103
      %p105 = scmp.ne.s32.totalorder %s94, %s97
      %p106 = scmp.eq.s32.totalorder %s23, 1
      %p107 = por %p105, %p106
      %p108 = scmp.ne.s32.totalorder %s97, %s98
      %p109 = scmp.eq.s32.totalorder %s23, 0
      %p110 = por %p108, %p109
      %p111 = scmp.ne.s32.totalorder %s97, %s98
      %p112 = scmp.eq.s32.totalorder %s24, 1
      %p113 = por %p111, %p112
      %p115 = scmp.ne.s32.totalorder %s98, %s114
      %p116 = scmp.eq.s32.totalorder %s24, 0
      %p117 = por %p115, %p116
      %s118 = ssub.s32 %s26, %s33
      %p119 = scmp.eq.s32.totalorder %s118, 0
      %s121 = sadd.s32 %s120, 1
      %s122 = scalar_select %p119, %s120, %s121
      %p125 = pneg %p119
      %p126 = scmp.eq.s32.totalorder %s18, 1
      %p127 = por %p125, %p126
      %p128 = scmp.ne.s32.totalorder %s120, %s123
      %p129 = scmp.eq.s32.totalorder %s18, 0
      %p130 = por %p128, %p129
      %p131 = scmp.ne.s32.totalorder %s120, %s123
      %p132 = scmp.eq.s32.totalorder %s23, 1
      %p133 = por %p131, %p132
      %p134 = scmp.ne.s32.totalorder %s123, %s124
      %p135 = scmp.eq.s32.totalorder %s23, 0
      %p136 = por %p134, %p135
      %p137 = scmp.ne.s32.totalorder %s123, %s124
      %p138 = scmp.eq.s32.totalorder %s24, 1
      %p139 = por %p137, %p138
      %p141 = scmp.ne.s32.totalorder %s124, %s140
      %p142 = scmp.eq.s32.totalorder %s24, 0
      %p143 = por %p141, %p142
      %s144 = ssub.s32 %s26, %s33
      %p145 = scmp.eq.s32.totalorder %s144, 0
      %s147 = sadd.s32 %s146, 1
      %s148 = scalar_select %p145, %s146, %s147
      %p151 = pneg %p145
      %p152 = scmp.eq.s32.totalorder %s18, 1
      %p153 = por %p151, %p152
      %p154 = scmp.ne.s32.totalorder %s146, %s149
      %p155 = scmp.eq.s32.totalorder %s18, 0
      %p156 = por %p154, %p155
      %p157 = scmp.ne.s32.totalorder %s146, %s149
      %p158 = scmp.eq.s32.totalorder %s23, 1
      %p159 = por %p157, %p158
      %p160 = scmp.ne.s32.totalorder %s149, %s150
      %p161 = scmp.eq.s32.totalorder %s23, 0
      %p162 = por %p160, %p161
      %p163 = scmp.ne.s32.totalorder %s149, %s150
      %p164 = scmp.eq.s32.totalorder %s24, 1
      %p165 = por %p163, %p164
      %p167 = scmp.ne.s32.totalorder %s150, %s166
      %p168 = scmp.eq.s32.totalorder %s24, 0
      %p169 = por %p167, %p168
      %s170 = ssub.s32 %s26, %s33
      %s171 = ssub.s32 %s25, %s37
      %s172 = sor.u32 %s170, %s171
      %p173 = scmp.eq.s32.totalorder %s172, 0
      %s175 = sadd.s32 %s174, 1
      %s176 = scalar_select %p173, %s174, %s175
      %p179 = pneg %p173
      %p180 = scmp.eq.s32.totalorder %s18, 1
      %p181 = por %p179, %p180
      %p182 = scmp.ne.s32.totalorder %s174, %s177
      %p183 = scmp.eq.s32.totalorder %s18, 0
      %p184 = por %p182, %p183
      %p185 = scmp.ne.s32.totalorder %s174, %s177
      %p186 = scmp.eq.s32.totalorder %s23, 1
      %p187 = por %p185, %p186
      %p188 = scmp.ne.s32.totalorder %s177, %s178
      %p189 = scmp.eq.s32.totalorder %s23, 0
      %p190 = por %p188, %p189
      %p191 = scmp.ne.s32.totalorder %s177, %s178
      %p192 = scmp.eq.s32.totalorder %s24, 1
      %p193 = por %p191, %p192
      %p195 = scmp.ne.s32.totalorder %s178, %s194
      %p196 = scmp.eq.s32.totalorder %s24, 0
      %p197 = por %p195, %p196
      %p198 = scmp.le.s32.totalorder 1, %s18
      %p199 = scmp.lt.s32.totalorder %s18, 3
      %p200 = pnand %p198, %p199
      %p201 = pneg %p200
      // Predicated region
      $region9: #{gru_net_forward.1} parent=5 // pred_check
        _
      $region10: #{gru_net_forward.1} parent=5 // pred_check_branch
        %203 = sbr.rel (%p200) target = $region12
      $region11: #{gru_net_forward.1} parent=5 // pred_region
        %s204 = ssub.s32 %s18, 1
      $region12: #{gru_net_forward.1} parent=5 // pred_fallthru
        _
      %p205 = scmp.lt.s32.totalorder %s18, 2
      // Predicated region
      $region13: #{gru_net_forward.1} parent=5 // pred_check
        %p206 = pneg %p205
      $region14: #{gru_net_forward.1} parent=5 // pred_check_branch
        %208 = sbr.rel (%p206) target = $region16
      $region15: #{gru_net_forward.1} parent=5 // pred_region
        // Predicated region
        $region17: #{gru_net_forward.1} parent=15 // pred_check
          %p209 = pneg %p52
        $region18: #{gru_net_forward.1} parent=15 // pred_check_branch
          %211 = sbr.rel (%p209) target = $region20
        $region19: #{gru_net_forward.1} parent=15 // pred_region
          %s212 = smul.u32 2, %s25
          %p213 = scmp.lt.s32.totalorder %s26, 1
          %s214 = scalar_select %p213, %s26, 1
          %p215 = scmp.lt.s32.totalorder %s212, 1
          %s216 = scalar_select %p215, %s212, 1
          %s217 = smul.addr %s214, 2
          %s218 = sadd.s32 %s216, %s217
          %s219 = smul.addr %s218, 8
          %s220 = scalar_lea.vmem %s1, %s219
          %s221 = smul.u32 2, %s25
        $region20: #{gru_net_forward.1} parent=15 // pred_fallthru
          _
        // Predicated region
        $region21: #{gru_net_forward.1} parent=15 // pred_check
          %p222 = pneg %p78
        $region22: #{gru_net_forward.1} parent=15 // pred_check_branch
          %224 = sbr.rel (%p222) target = $region24
        $region23: #{gru_net_forward.1} parent=15 // pred_region
          %s225 = sand.u32 %s68, 1
          %s226 = scalar_lea.sflag [#allocation6], %s225
          %s227 = sand.u32 %s68, 1
          %s228 = smul.addr %s227, 192
          %s229 = scalar_lea.vmem [#allocation5], %s228
          %231 = vsyncadd %s226, 0
          %s232 = smul.addr %s26, 48
          %s233 = smul.addr %s232, 4
          %s234 = scalar_lea.hbm %s2, %s233
          %s235 = sshll.u32 %s234, 4
          %s236 = int_to_ptr.hbm [resolvable:$true] %s235
          %s237 = sshll.u32 %s229, 4
          %s238 = int_to_ptr.vmem [resolvable:$true] %s237
          %243 = dma.hbm_to_vmem [thread:$0]  %s236, 3072, %s238, %s226, 192, 192, 12
        $region24: #{gru_net_forward.1} parent=15 // pred_fallthru
          _
        // Predicated region
        $region25: #{gru_net_forward.1} parent=15 // pred_check
          %p244 = pneg %p104
        $region26: #{gru_net_forward.1} parent=15 // pred_check_branch
          %246 = sbr.rel (%p244) target = $region28
        $region27: #{gru_net_forward.1} parent=15 // pred_region
          %s247 = sand.u32 %s94, 1
          %s248 = scalar_lea.sflag [#allocation8], %s247
          %s249 = sand.u32 %s94, 1
          %s250 = smul.addr %s249, 192
          %s251 = scalar_lea.vmem [#allocation7], %s250
          %253 = vsyncadd %s248, 0
          %s254 = smul.addr %s26, 48
          %s255 = smul.addr %s254, 4
          %s256 = scalar_lea.hbm %s3, %s255
          %s257 = sshll.u32 %s256, 4
          %s258 = int_to_ptr.hbm [resolvable:$true] %s257
          %s259 = sshll.u32 %s251, 4
          %s260 = int_to_ptr.vmem [resolvable:$true] %s259
          %265 = dma.hbm_to_vmem [thread:$0]  %s258, 3072, %s260, %s248, 192, 192, 12
        $region28: #{gru_net_forward.1} parent=15 // pred_fallthru
          _
        // Predicated region
        $region29: #{gru_net_forward.1} parent=15 // pred_check
          %p266 = pneg %p130
        $region30: #{gru_net_forward.1} parent=15 // pred_check_branch
          %268 = sbr.rel (%p266) target = $region32
        $region31: #{gru_net_forward.1} parent=15 // pred_region
          %p269 = scmp.lt.s32.totalorder %s26, 1
          %s270 = scalar_select %p269, %s26, 1
          %s271 = smul.addr %s270, 3
          %s272 = scalar_lea.vmem %s4, %s271
        $region32: #{gru_net_forward.1} parent=15 // pred_fallthru
          _
        // Predicated region
        $region33: #{gru_net_forward.1} parent=15 // pred_check
          %p273 = pneg %p156
        $region34: #{gru_net_forward.1} parent=15 // pred_check_branch
          %275 = sbr.rel (%p273) target = $region36
        $region35: #{gru_net_forward.1} parent=15 // pred_region
          %p276 = scmp.lt.s32.totalorder %s26, 1
          %s277 = scalar_select %p276, %s26, 1
          %s278 = scalar_lea.vmem %s5, %s277
        $region36: #{gru_net_forward.1} parent=15 // pred_fallthru
          _
      $region16: #{gru_net_forward.1} parent=5 // pred_fallthru
        _
      %p279 = scmp.le.s32.totalorder 1, %s18
      %p280 = scmp.lt.s32.totalorder %s18, 3
      %p281 = pnand %p279, %p280
      %p282 = pneg %p281
      // Predicated region
      $region37: #{gru_net_forward.1} parent=5 // pred_check
        _
      $region38: #{gru_net_forward.1} parent=5 // pred_check_branch
        %284 = sbr.rel (%p281) target = $region40
      $region39: #{gru_net_forward.1} parent=5 // pred_region
        %s285 = ssub.s32 %s18, 1
        %s286 = sand.u32 %s71, 1
        %s287 = scalar_lea.sflag [#allocation6], %s286
        %s288 = sand.u32 %s71, 1
        %s289 = smul.addr %s288, 192
        %s290 = scalar_lea.vmem [#allocation5], %s289
        // Predicated region
        $region41: #{gru_net_forward.1} parent=39 // pred_check
          %p291 = pneg %p84
        $region42: #{gru_net_forward.1} parent=39 // pred_check_branch
          %293 = sbr.rel (%p291) target = $region44
        $region43: #{gru_net_forward.1} parent=39 // pred_region
          %295 = dma.done %s287, 3072
        $region44: #{gru_net_forward.1} parent=39 // pred_fallthru
          _
        %s296 = sand.u32 %s97, 1
        %s297 = scalar_lea.sflag [#allocation8], %s296
        %s298 = sand.u32 %s97, 1
        %s299 = smul.addr %s298, 192
        %s300 = scalar_lea.vmem [#allocation7], %s299
        // Predicated region
        $region45: #{gru_net_forward.1} parent=39 // pred_check
          %p301 = pneg %p110
        $region46: #{gru_net_forward.1} parent=39 // pred_check_branch
          %303 = sbr.rel (%p301) target = $region48
        $region47: #{gru_net_forward.1} parent=39 // pred_region
          %305 = dma.done %s297, 3072
        $region48: #{gru_net_forward.1} parent=39 // pred_fallthru
          _
        %s306 = smul.u32 2, %s27
        %p307 = scmp.lt.s32.totalorder %s28, 1
        %s308 = scalar_select %p307, %s28, 1
        %p309 = scmp.lt.s32.totalorder %s306, 1
        %s310 = scalar_select %p309, %s306, 1
        %s311 = smul.addr %s308, 2
        %s312 = sadd.s32 %s310, %s311
        %s313 = smul.addr %s312, 8
        %s314 = scalar_lea.vmem %s1, %s313
        %p315 = pneg %p58
        %p316 = pneg %p55
        %s317 = sand.u32 %s71, 1
        %s318 = scalar_lea.sflag [#allocation6], %s317
        %s319 = sand.u32 %s71, 1
        %s320 = smul.addr %s319, 192
        %s321 = scalar_lea.vmem [#allocation5], %s320
        %p322 = pneg %p84
        %p323 = pneg %p81
        %s324 = sand.u32 %s97, 1
        %s325 = scalar_lea.sflag [#allocation8], %s324
        %s326 = sand.u32 %s97, 1
        %s327 = smul.addr %s326, 192
        %s328 = scalar_lea.vmem [#allocation7], %s327
        %p329 = pneg %p110
        %p330 = pneg %p107
        %p331 = scmp.lt.s32.totalorder %s28, 1
        %s332 = scalar_select %p331, %s28, 1
        %s333 = smul.addr %s332, 3
        %s334 = scalar_lea.vmem %s4, %s333
        %p335 = pneg %p136
        %p336 = pneg %p133
        %p337 = scmp.lt.s32.totalorder %s28, 1
        %s338 = scalar_select %p337, %s28, 1
        %s339 = scalar_lea.vmem %s5, %s338
        %p340 = pneg %p162
        %p341 = pneg %p159
        %p342 = pneg %p190
        %p343 = pneg %p187
        %s344 = smul.u32 2, %s27
        %p345 = scmp.lt.s32.totalorder %s28, 1
        %s346 = scalar_select %p345, %s28, 1
        %p347 = scmp.lt.s32.totalorder %s344, 1
        %s348 = scalar_select %p347, %s344, 1
        %s349 = smul.addr %s346, 2
        %s350 = sadd.s32 %s348, %s349
        %s351 = smul.addr %s350, 8
        %s352 = scalar_lea.vmem %s6, %s351
        %s353 = smul.u32 2, %s27
        %p354 = scmp.lt.s32.totalorder %s28, 1
        %s355 = scalar_select %p354, %s28, 1
        %p356 = scmp.lt.s32.totalorder %s353, 1
        %s357 = scalar_select %p356, %s353, 1
        %s358 = smul.addr %s355, 2
        %s359 = sadd.s32 %s357, %s358
        %s360 = smul.addr %s359, 8
        %s361 = scalar_lea.vmem %s1, %s360
        %s362 = smul.u32 2, %s27
        %p363 = scmp.lt.s32.totalorder %s28, 1
        %s364 = scalar_select %p363, %s28, 1
        %s365 = smul.addr %s364, 3
        %s366 = scalar_lea.vmem %s4, %s365
        %p367 = scmp.lt.s32.totalorder %s28, 1
        %s368 = scalar_select %p367, %s28, 1
        %s369 = scalar_lea.vmem %s5, %s368
        %s370 = smul.u32 2, %s27
        %p371 = scmp.lt.s32.totalorder %s28, 1
        %s372 = scalar_select %p371, %s28, 1
        %p373 = scmp.lt.s32.totalorder %s370, 1
        %s374 = scalar_select %p373, %s370, 1
        %s375 = smul.addr %s372, 2
        %s376 = sadd.s32 %s374, %s375
        %s377 = smul.addr %s376, 8
        %s378 = scalar_lea.vmem %s6, %s377
        %s379 = smul.u32 2, %s27
        %p380 = scmp.eq.s32.totalorder %s28, 0
        // Predicated region
        $region49: #{gru_net_forward.1} parent=39 // pred_check
          %p381 = pneg %p380
        $region50: #{gru_net_forward.1} parent=39 // pred_check_branch
          %383 = sbr.rel (%p381) target = $region52
        $region51: #{gru_net_forward.1} parent=39 // pred_region
          %s384 = smul.u32 %s27, 4
          %s385 = smul.addr %s384, 4
          %s386 = scalar_lea.vmem %s0, %s385
          // Predicated region
          $region53: #{gru_net_forward.1} parent=51 // pred_check
            _
          $region54: #{gru_net_forward.1} parent=51 // pred_check_branch
            %388 = sbr.rel (0) target = $region56
          $region55: #{gru_net_forward.1} parent=51 // pred_region
            loop: start=0, step=1, limit=1
            $region57: #{gru_net_forward.1} parent=55 // loop_pre_header
              _
            $region58: #{gru_net_forward.1} parent=55 // loop_header
              %s390 = sphi 0, %s394
              %p391 = scmp.ge.s32.totalorder %s390, 1
              %s395 = sphi %s386, %s386
              %s396 = sphi [#allocation2], [#allocation2]
            $region59: #{gru_net_forward.1} parent=55 // loop_header_branch
              %393 = sbr.rel (%p391) target = $region63
            $region60: #{gru_net_forward.1} parent=55 // loop_body
              %v397 = vld [vmem:[%s395] sm:$0xff]
              %398 = vst [vmem:[%s396] sm:$0xff] %v397
              %v399 = vld [vmem:[%s395 + $0x8] sm:$0xff]
              %400 = vst [vmem:[%s396 + $0x8] sm:$0xff] %v399
            $region61: #{gru_net_forward.1} parent=55 // loop_footer
              %s394 = sadd.s32 1, %s390
            $region62: #{gru_net_forward.1} parent=55 // loop_footer_branch
              %389 = sbr.rel target = $region58
            $region63: #{gru_net_forward.1} parent=55 // loop_exit
              _
          $region56: #{gru_net_forward.1} parent=51 // pred_fallthru
            _
          // Predicated region
          $region64: #{gru_net_forward.1} parent=51 // pred_check
            _
          $region65: #{gru_net_forward.1} parent=51 // pred_check_branch
            %402 = sbr.rel target = $region67
          $region66: #{gru_net_forward.1} parent=51 // pred_region
            _
          $region67: #{gru_net_forward.1} parent=51 // pred_fallthru
            _
          // Predicated region
          $region68: #{gru_net_forward.1} parent=51 // pred_check
            _
          $region69: #{gru_net_forward.1} parent=51 // pred_check_branch
            %405 = sbr.rel (0) target = $region71
          $region70: #{gru_net_forward.1} parent=51 // pred_region
            %406 = vsyncadd [#allocation4], 256
          $region71: #{gru_net_forward.1} parent=51 // pred_fallthru
            _
          %s407 = smul.u32 4, 4
          %s408 = smul.u32 %s407, 1
          %s409 = sshll.u32 %s408, 4
          %410 = dma.done [#allocation4], %s409
        $region52: #{gru_net_forward.1} parent=39 // pred_fallthru
          _
        %v411 = vld [vmem:[%s290] sm:$0xff]
        %v412 = vld [vmem:[%s290 + $0x8] sm:$0xf]
        %v413 = vld [vmem:[%s290 + $0xc] sm:$0xff]
        %v414 = vld [vmem:[%s290 + $0x14] sm:$0xf]
        %v415 = vld [vmem:[%s290 + $0x18] sm:$0xff]
        %v416 = vld [vmem:[%s290 + $0x20] sm:$0xf]
        %v417 = vld [vmem:[%s290 + $0x24] sm:$0xff]
        %v418 = vld [vmem:[%s290 + $0x2c] sm:$0xf]
        %v419 = vld [vmem:[%s290 + $0x30] sm:$0xff]
        %v420 = vld [vmem:[%s290 + $0x38] sm:$0xf]
        %v421 = vld [vmem:[%s290 + $0x3c] sm:$0xff]
        %v422 = vld [vmem:[%s290 + $0x44] sm:$0xf]
        %v423 = vld [vmem:[%s290 + $0x48] sm:$0xff]
        %v424 = vld [vmem:[%s290 + $0x50] sm:$0xf]
        %v425 = vld [vmem:[%s290 + $0x54] sm:$0xff]
        %v426 = vld [vmem:[%s290 + $0x5c] sm:$0xf]
        %v427 = vld [vmem:[%s290 + $0x60] sm:$0xff]
        %v428 = vld [vmem:[%s290 + $0x68] sm:$0xf]
        %v429 = vld [vmem:[%s290 + $0x6c] sm:$0xff]
        %v430 = vld [vmem:[%s290 + $0x74] sm:$0xf]
        %v431 = vld [vmem:[%s290 + $0x78] sm:$0xff]
        %v432 = vld [vmem:[%s290 + $0x80] sm:$0xf]
        %v433 = vld [vmem:[%s290 + $0x84] sm:$0xff]
        %v434 = vld [vmem:[%s290 + $0x8c] sm:$0xf]
        %v435 = vld [vmem:[%s290 + $0x90] sm:$0xff]
        %v436 = vld [vmem:[%s290 + $0x98] sm:$0xf]
        %v437 = vld [vmem:[%s290 + $0x9c] sm:$0xff]
        %v438 = vld [vmem:[%s290 + $0xa4] sm:$0xf]
        %v439 = vld [vmem:[%s290 + $0xa8] sm:$0xff]
        %v440 = vld [vmem:[%s290 + $0xb0] sm:$0xf]
        %v441 = vld [vmem:[%s290 + $0xb4] sm:$0xff]
        %v442 = vld [vmem:[%s290 + $0xbc] sm:$0xf]
        %v443 = vld [vmem:[%s300] sm:$0xff]
        %v444 = vld [vmem:[%s300 + $0x8] sm:$0xf]
        %v445 = vld [vmem:[%s300 + $0xc] sm:$0xff]
        %v446 = vld [vmem:[%s300 + $0x14] sm:$0xf]
        %v447 = vld [vmem:[%s300 + $0x18] sm:$0xff]
        %v448 = vld [vmem:[%s300 + $0x20] sm:$0xf]
        %v449 = vld [vmem:[%s300 + $0x24] sm:$0xff]
        %v450 = vld [vmem:[%s300 + $0x2c] sm:$0xf]
        %v451 = vld [vmem:[%s300 + $0x30] sm:$0xff]
        %v452 = vld [vmem:[%s300 + $0x38] sm:$0xf]
        %v453 = vld [vmem:[%s300 + $0x3c] sm:$0xff]
        %v454 = vld [vmem:[%s300 + $0x44] sm:$0xf]
        %v455 = vld [vmem:[%s300 + $0x48] sm:$0xff]
        %v456 = vld [vmem:[%s300 + $0x50] sm:$0xf]
        %v457 = vld [vmem:[%s300 + $0x54] sm:$0xff]
        %v458 = vld [vmem:[%s300 + $0x5c] sm:$0xf]
        %v459 = vld [vmem:[%s300 + $0x60] sm:$0xff]
        %v460 = vld [vmem:[%s300 + $0x68] sm:$0xf]
        %v461 = vld [vmem:[%s300 + $0x6c] sm:$0xff]
        %v462 = vld [vmem:[%s300 + $0x74] sm:$0xf]
        %v463 = vld [vmem:[%s300 + $0x78] sm:$0xff]
        %v464 = vld [vmem:[%s300 + $0x80] sm:$0xf]
        %v465 = vld [vmem:[%s300 + $0x84] sm:$0xff]
        %v466 = vld [vmem:[%s300 + $0x8c] sm:$0xf]
        %v467 = vld [vmem:[%s300 + $0x90] sm:$0xff]
        %v468 = vld [vmem:[%s300 + $0x98] sm:$0xf]
        %v469 = vld [vmem:[%s300 + $0x9c] sm:$0xff]
        %v470 = vld [vmem:[%s300 + $0xa4] sm:$0xf]
        %v471 = vld [vmem:[%s300 + $0xa8] sm:$0xff]
        %v472 = vld [vmem:[%s300 + $0xb0] sm:$0xf]
        %v473 = vld [vmem:[%s300 + $0xb4] sm:$0xff]
        %v474 = vld [vmem:[%s300 + $0xbc] sm:$0xf]
        %v475 = vld [vmem:[%s366] sm:$0x7]
        %v476 = vld [vmem:[%s369] sm:$0x1]
        %v478 = vperm.slane %v476, 0
        %v480 = vld [vmem:[#allocation2] sm:$0xf]
        %v481 = vld [vmem:[#allocation2 + $0x4] sm:$0xf]
        %v482 = vld [vmem:[#allocation2 + $0x8] sm:$0xf]
        %v483 = vld [vmem:[#allocation2 + $0xc] sm:$0xf]
        %v485 = vperm.slane %v475, 0
        %v486 = vperm.slane %v475, 1
        %v487 = vperm.slane %v475, 2
        %v495 = vunpack.c.l.b16 %v480
        %v496 = vunpack.c.l.b16 %v481
        %v497 = vunpack.c.l.b16 %v482
        %v498 = vunpack.c.l.b16 %v483
        %v499 = vpack.c.b16 %v496, %v495
        %v500 = vpack.c.b16 %v498, %v497
        %v535 = vunpack.c.l.b16 %v411
        %v536 = vunpack.c.h.b16 %v411
        %v537 = vunpack.c.l.b16 %v412
        %v538 = vunpack.c.l.b16 %v413
        %v539 = vunpack.c.h.b16 %v413
        %v540 = vunpack.c.l.b16 %v414
        %v541 = vunpack.c.l.b16 %v415
        %v542 = vunpack.c.h.b16 %v415
        %v543 = vunpack.c.l.b16 %v416
        %v544 = vunpack.c.l.b16 %v417
        %v545 = vunpack.c.h.b16 %v417
        %v546 = vunpack.c.l.b16 %v418
        %v547 = vunpack.c.l.b16 %v419
        %v548 = vunpack.c.h.b16 %v419
        %v549 = vunpack.c.l.b16 %v420
        %v550 = vunpack.c.l.b16 %v421
        %v551 = vunpack.c.h.b16 %v421
        %v552 = vunpack.c.l.b16 %v422
        %v553 = vunpack.c.l.b16 %v423
        %v554 = vunpack.c.h.b16 %v423
        %v555 = vunpack.c.l.b16 %v424
        %v556 = vunpack.c.l.b16 %v425
        %v557 = vunpack.c.h.b16 %v425
        %v558 = vunpack.c.l.b16 %v426
        %v559 = vunpack.c.l.b16 %v427
        %v560 = vunpack.c.h.b16 %v427
        %v561 = vunpack.c.l.b16 %v428
        %v562 = vunpack.c.l.b16 %v429
        %v563 = vunpack.c.h.b16 %v429
        %v564 = vunpack.c.l.b16 %v430
        %v565 = vunpack.c.l.b16 %v431
        %v566 = vunpack.c.h.b16 %v431
        %v567 = vunpack.c.l.b16 %v432
        %v568 = vunpack.c.l.b16 %v433
        %v569 = vunpack.c.h.b16 %v433
        %v570 = vunpack.c.l.b16 %v434
        %v571 = vunpack.c.l.b16 %v435
        %v572 = vunpack.c.h.b16 %v435
        %v573 = vunpack.c.l.b16 %v436
        %v574 = vunpack.c.l.b16 %v437
        %v575 = vunpack.c.h.b16 %v437
        %v576 = vunpack.c.l.b16 %v438
        %v577 = vunpack.c.l.b16 %v439
        %v578 = vunpack.c.h.b16 %v439
        %v579 = vunpack.c.l.b16 %v440
        %v580 = vunpack.c.l.b16 %v441
        %v581 = vunpack.c.h.b16 %v441
        %v582 = vunpack.c.l.b16 %v442
        %v583 = vpack.c.b16 %v538, %v535
        %v584 = vpack.c.b16 %v539, %v536
        %v585 = vpack.c.b16 %v540, %v537
        %v586 = vpack.c.b16 %v544, %v541
        %v587 = vpack.c.b16 %v545, %v542
        %v588 = vpack.c.b16 %v546, %v543
        %v589 = vpack.c.b16 %v550, %v547
        %v590 = vpack.c.b16 %v551, %v548
        %v591 = vpack.c.b16 %v552, %v549
        %v592 = vpack.c.b16 %v556, %v553
        %v593 = vpack.c.b16 %v557, %v554
        %v594 = vpack.c.b16 %v558, %v555
        %v595 = vpack.c.b16 %v562, %v559
        %v596 = vpack.c.b16 %v563, %v560
        %v597 = vpack.c.b16 %v564, %v561
        %v598 = vpack.c.b16 %v568, %v565
        %v599 = vpack.c.b16 %v569, %v566
        %v600 = vpack.c.b16 %v570, %v567
        %v601 = vpack.c.b16 %v574, %v571
        %v602 = vpack.c.b16 %v575, %v572
        %v603 = vpack.c.b16 %v576, %v573
        %v604 = vpack.c.b16 %v580, %v577
        %v605 = vpack.c.b16 %v581, %v578
        %v606 = vpack.c.b16 %v582, %v579
        %631 = vmatpush.bf16.msra.mxu0 %v604
        %632 = vmatpush.bf16.msra.mxu0 %v601
        %633 = vmatpush.bf16.msra.mxu0 %v598
        %634 = vmatpush.bf16.msra.mxu0 %v595
        %635 = vmatpush.bf16.msra.mxu0 %v592
        %636 = vmatpush.bf16.msra.mxu0 %v589
        %637 = vmatpush.bf16.msra.mxu0 %v586
        %638 = vmatpush.bf16.msra.mxu0 %v583
        %639 = vmatmul.bf16.gmra.mxu0 %v499
        %v640 = vpop.f32.mrf.mxu0
        %v641 = vadd.f32 %v485, %v640
        %v642 = vpop.f32.mrf.mxu0
        %v643 = vadd.f32 %v485, %v642
        %644 = vmatmul.bf16.gmra.mxu0 %v500
        %v645 = vpop.f32.mrf.mxu0
        %v646 = vadd.f32 %v485, %v645
        %v647 = vpop.f32.mrf.mxu0
        %v648 = vadd.f32 %v485, %v647
        %649 = vdwg.mxu0
        %650 = vmatpush.bf16.msra.mxu0 %v605
        %651 = vmatpush.bf16.msra.mxu0 %v602
        %652 = vmatpush.bf16.msra.mxu0 %v599
        %653 = vmatpush.bf16.msra.mxu0 %v596
        %654 = vmatpush.bf16.msra.mxu0 %v593
        %655 = vmatpush.bf16.msra.mxu0 %v590
        %656 = vmatpush.bf16.msra.mxu0 %v587
        %657 = vmatpush.bf16.msra.mxu0 %v584
        %658 = vmatmul.bf16.gmra.mxu0 %v499
        %v659 = vpop.f32.mrf.mxu0
        %v660 = vadd.f32 %v486, %v659
        %v661 = vpop.f32.mrf.mxu0
        %v662 = vadd.f32 %v486, %v661
        %663 = vmatmul.bf16.gmra.mxu0 %v500
        %v664 = vpop.f32.mrf.mxu0
        %v665 = vadd.f32 %v486, %v664
        %v666 = vpop.f32.mrf.mxu0
        %v667 = vadd.f32 %v486, %v666
        %668 = vdwg.mxu0
        %669 = vmatpush.bf16.msra.mxu0 %v606
        %670 = vmatpush.bf16.msra.mxu0 %v603
        %671 = vmatpush.bf16.msra.mxu0 %v600
        %672 = vmatpush.bf16.msra.mxu0 %v597
        %673 = vmatpush.bf16.msra.mxu0 %v594
        %674 = vmatpush.bf16.msra.mxu0 %v591
        %675 = vmatpush.bf16.msra.mxu0 %v588
        %676 = vmatpush.bf16.msra.mxu0 %v585
        %677 = vmatmul.bf16.gmra.mxu0 %v499
        %v678 = vpop.f32.mrf.mxu0
        %v679 = vadd.f32 %v487, %v678
        %v680 = vpop.f32.mrf.mxu0
        %v681 = vadd.f32 %v487, %v680
        %682 = vmatmul.bf16.gmra.mxu0 %v500
        %v683 = vpop.f32.mrf.mxu0
        %v684 = vadd.f32 %v487, %v683
        %v685 = vpop.f32.mrf.mxu0
        %v686 = vadd.f32 %v487, %v685
        %687 = vdwg.mxu0
        %688 = vst [vmem:[#allocation3] sm:$0xff] %v641
        %689 = vst [vmem:[#allocation3 + $0x8] sm:$0xff] %v660
        %690 = vst [vmem:[#allocation3 + $0x10] sm:$0xff] %v679
        %691 = vst [vmem:[#allocation3 + $0x18] sm:$0xff] %v643
        %692 = vst [vmem:[#allocation3 + $0x20] sm:$0xff] %v662
        %693 = vst [vmem:[#allocation3 + $0x28] sm:$0xff] %v681
        %694 = vst [vmem:[#allocation3 + $0x30] sm:$0xff] %v646
        %695 = vst [vmem:[#allocation3 + $0x38] sm:$0xff] %v665
        %696 = vst [vmem:[#allocation3 + $0x40] sm:$0xff] %v684
        %697 = vst [vmem:[#allocation3 + $0x48] sm:$0xff] %v648
        %698 = vst [vmem:[#allocation3 + $0x50] sm:$0xff] %v667
        %699 = vst [vmem:[#allocation3 + $0x58] sm:$0xff] %v686
        %v700 = vld [vmem:[%s361] sm:$0xff]
        %v701 = vld [vmem:[%s361 + $0x8] sm:$0xff]
        %s702 = smul.u32 0, 3
        %s703 = smul.addr %s702, 8
        %s704 = scalar_lea.vmem [#allocation3], %s703
        %v705 = vld [vmem:[%s704] sm:$0xff]
        %v706 = vld [vmem:[%s704 + $0x8] sm:$0xff]
        %v707 = vld [vmem:[%s704 + $0x10] sm:$0xff]
        %v708 = vld [vmem:[%s704 + $0x18] sm:$0xff]
        %v709 = vld [vmem:[%s704 + $0x20] sm:$0xff]
        %v710 = vld [vmem:[%s704 + $0x28] sm:$0xff]
        %v711 = vpack.c.bf16 %v701, %v700
        %v744 = vunpack.c.l.b16 %v443
        %v745 = vunpack.c.h.b16 %v443
        %v746 = vunpack.c.l.b16 %v444
        %v747 = vunpack.c.l.b16 %v445
        %v748 = vunpack.c.h.b16 %v445
        %v749 = vunpack.c.l.b16 %v446
        %v750 = vunpack.c.l.b16 %v447
        %v751 = vunpack.c.h.b16 %v447
        %v752 = vunpack.c.l.b16 %v448
        %v753 = vunpack.c.l.b16 %v449
        %v754 = vunpack.c.h.b16 %v449
        %v755 = vunpack.c.l.b16 %v450
        %v756 = vunpack.c.l.b16 %v451
        %v757 = vunpack.c.h.b16 %v451
        %v758 = vunpack.c.l.b16 %v452
        %v759 = vunpack.c.l.b16 %v453
        %v760 = vunpack.c.h.b16 %v453
        %v761 = vunpack.c.l.b16 %v454
        %v762 = vunpack.c.l.b16 %v455
        %v763 = vunpack.c.h.b16 %v455
        %v764 = vunpack.c.l.b16 %v456
        %v765 = vunpack.c.l.b16 %v457
        %v766 = vunpack.c.h.b16 %v457
        %v767 = vunpack.c.l.b16 %v458
        %v768 = vunpack.c.l.b16 %v459
        %v769 = vunpack.c.h.b16 %v459
        %v770 = vunpack.c.l.b16 %v460
        %v771 = vunpack.c.l.b16 %v461
        %v772 = vunpack.c.h.b16 %v461
        %v773 = vunpack.c.l.b16 %v462
        %v774 = vunpack.c.l.b16 %v463
        %v775 = vunpack.c.h.b16 %v463
        %v776 = vunpack.c.l.b16 %v464
        %v777 = vunpack.c.l.b16 %v465
        %v778 = vunpack.c.h.b16 %v465
        %v779 = vunpack.c.l.b16 %v466
        %v780 = vunpack.c.l.b16 %v467
        %v781 = vunpack.c.h.b16 %v467
        %v782 = vunpack.c.l.b16 %v468
        %v783 = vunpack.c.l.b16 %v469
        %v784 = vunpack.c.h.b16 %v469
        %v785 = vunpack.c.l.b16 %v470
        %v786 = vunpack.c.l.b16 %v471
        %v787 = vunpack.c.h.b16 %v471
        %v788 = vunpack.c.l.b16 %v472
        %v789 = vunpack.c.l.b16 %v473
        %v790 = vunpack.c.h.b16 %v473
        %v791 = vunpack.c.l.b16 %v474
        %v792 = vpack.c.b16 %v747, %v744
        %v793 = vpack.c.b16 %v748, %v745
        %v794 = vpack.c.b16 %v749, %v746
        %v795 = vpack.c.b16 %v753, %v750
        %v796 = vpack.c.b16 %v754, %v751
        %v797 = vpack.c.b16 %v755, %v752
        %v798 = vpack.c.b16 %v759, %v756
        %v799 = vpack.c.b16 %v760, %v757
        %v800 = vpack.c.b16 %v761, %v758
        %v801 = vpack.c.b16 %v765, %v762
        %v802 = vpack.c.b16 %v766, %v763
        %v803 = vpack.c.b16 %v767, %v764
        %v804 = vpack.c.b16 %v771, %v768
        %v805 = vpack.c.b16 %v772, %v769
        %v806 = vpack.c.b16 %v773, %v770
        %v807 = vpack.c.b16 %v777, %v774
        %v808 = vpack.c.b16 %v778, %v775
        %v809 = vpack.c.b16 %v779, %v776
        %v810 = vpack.c.b16 %v783, %v780
        %v811 = vpack.c.b16 %v784, %v781
        %v812 = vpack.c.b16 %v785, %v782
        %v813 = vpack.c.b16 %v789, %v786
        %v814 = vpack.c.b16 %v790, %v787
        %v815 = vpack.c.b16 %v791, %v788
        %840 = vmatpush.bf16.msra.mxu0 %v813
        %841 = vmatpush.bf16.msra.mxu0 %v810
        %842 = vmatpush.bf16.msra.mxu0 %v807
        %843 = vmatpush.bf16.msra.mxu0 %v804
        %844 = vmatpush.bf16.msra.mxu0 %v801
        %845 = vmatpush.bf16.msra.mxu0 %v798
        %846 = vmatpush.bf16.msra.mxu0 %v795
        %847 = vmatpush.bf16.msra.mxu0 %v792
        %848 = vmatmul.bf16.gmra.mxu0 %v711
        %v849 = vpop.f32.mrf.mxu0
        %v850 = vadd.f32 0.0, %v849
        %v851 = vpop.f32.mrf.mxu0
        %v852 = vadd.f32 0.0, %v851
        %853 = vdwg.mxu0
        %854 = vmatpush.bf16.msra.mxu0 %v814
        %855 = vmatpush.bf16.msra.mxu0 %v811
        %856 = vmatpush.bf16.msra.mxu0 %v808
        %857 = vmatpush.bf16.msra.mxu0 %v805
        %858 = vmatpush.bf16.msra.mxu0 %v802
        %859 = vmatpush.bf16.msra.mxu0 %v799
        %860 = vmatpush.bf16.msra.mxu0 %v796
        %861 = vmatpush.bf16.msra.mxu0 %v793
        %862 = vmatmul.bf16.gmra.mxu0 %v711
        %v863 = vpop.f32.mrf.mxu0
        %v864 = vadd.f32 0.0, %v863
        %v865 = vpop.f32.mrf.mxu0
        %v866 = vadd.f32 0.0, %v865
        %867 = vdwg.mxu0
        %868 = vmatpush.bf16.msra.mxu0 %v815
        %869 = vmatpush.bf16.msra.mxu0 %v812
        %870 = vmatpush.bf16.msra.mxu0 %v809
        %871 = vmatpush.bf16.msra.mxu0 %v806
        %872 = vmatpush.bf16.msra.mxu0 %v803
        %873 = vmatpush.bf16.msra.mxu0 %v800
        %874 = vmatpush.bf16.msra.mxu0 %v797
        %875 = vmatpush.bf16.msra.mxu0 %v794
        %876 = vmatmul.bf16.gmra.mxu0 %v711
        %v877 = vpop.f32.mrf.mxu0
        %v878 = vadd.f32 0.0, %v877
        %v879 = vpop.f32.mrf.mxu0
        %v880 = vadd.f32 0.0, %v879
        %881 = vdwg.mxu0
        %v882 = vadd.f32 %v705, %v850
        %v883 = vadd.f32 %v708, %v852
        %v884 = vxor.u32 %v882, 2147483648
        %v885 = vxor.u32 %v883, 2147483648
        %v886 = vmul.f32 %v884, 1.442695
        %v887 = vpow.pop %v886
        %v888 = vmul.f32 %v885, 1.442695
        %v889 = vpow.pop %v888
        %v890 = vadd.f32 %v887, 1.0
        %v891 = vadd.f32 %v889, 1.0
        %v892 = vrcp.pop %v890
        %v893 = vmul.f32 %v890, %v892
        %v894 = vsub.f32 1.0, %v893
        %v895 = vmul.f32 %v892, %v894
        %v896 = vadd.f32 %v892, %v895
        %vm897 = vweird.f32 %v890
        %vm898 = vweird.f32 %v892
        %vm899 = vmor %vm897, %vm898
        %v900 = vsel %vm899, %v892, %v896
        %v901 = vand.u32 2147483647, %v890
        %vm902 = vcmp.eq.f32.partialorder %v901, 8.507059e+37
        %v903 = vand.u32 %v890, 2147483648
        %v904 = vor.u32 1.1754944e-38, %v903
        %v905 = vsel %vm902, %v904, %v900
        %v906 = vmul.f32 1.0, %v905
        %v907 = vrcp.pop %v891
        %v908 = vmul.f32 %v891, %v907
        %v909 = vsub.f32 1.0, %v908
        %v910 = vmul.f32 %v907, %v909
        %v911 = vadd.f32 %v907, %v910
        %vm912 = vweird.f32 %v891
        %vm913 = vweird.f32 %v907
        %vm914 = vmor %vm912, %vm913
        %v915 = vsel %vm914, %v907, %v911
        %v916 = vand.u32 2147483647, %v891
        %vm917 = vcmp.eq.f32.partialorder %v916, 8.507059e+37
        %v918 = vand.u32 %v891, 2147483648
        %v919 = vor.u32 1.1754944e-38, %v918
        %v920 = vsel %vm917, %v919, %v915
        %v921 = vmul.f32 1.0, %v920
        %v922 = vadd.f32 %v706, %v864
        %v923 = vadd.f32 %v709, %v866
        %v924 = vxor.u32 %v922, 2147483648
        %v925 = vxor.u32 %v923, 2147483648
        %v926 = vmul.f32 %v924, 1.442695
        %v927 = vpow.pop %v926
        %v928 = vmul.f32 %v925, 1.442695
        %v929 = vpow.pop %v928
        %v930 = vadd.f32 %v927, 1.0
        %v931 = vadd.f32 %v929, 1.0
        %v932 = vrcp.pop %v930
        %v933 = vmul.f32 %v930, %v932
        %v934 = vsub.f32 1.0, %v933
        %v935 = vmul.f32 %v932, %v934
        %v936 = vadd.f32 %v932, %v935
        %vm937 = vweird.f32 %v930
        %vm938 = vweird.f32 %v932
        %vm939 = vmor %vm937, %vm938
        %v940 = vsel %vm939, %v932, %v936
        %v941 = vand.u32 2147483647, %v930
        %vm942 = vcmp.eq.f32.partialorder %v941, 8.507059e+37
        %v943 = vand.u32 %v930, 2147483648
        %v944 = vor.u32 1.1754944e-38, %v943
        %v945 = vsel %vm942, %v944, %v940
        %v946 = vmul.f32 1.0, %v945
        %v947 = vrcp.pop %v931
        %v948 = vmul.f32 %v931, %v947
        %v949 = vsub.f32 1.0, %v948
        %v950 = vmul.f32 %v947, %v949
        %v951 = vadd.f32 %v947, %v950
        %vm952 = vweird.f32 %v931
        %vm953 = vweird.f32 %v947
        %vm954 = vmor %vm952, %vm953
        %v955 = vsel %vm954, %v947, %v951
        %v956 = vand.u32 2147483647, %v931
        %vm957 = vcmp.eq.f32.partialorder %v956, 8.507059e+37
        %v958 = vand.u32 %v931, 2147483648
        %v959 = vor.u32 1.1754944e-38, %v958
        %v960 = vsel %vm957, %v959, %v955
        %v961 = vmul.f32 1.0, %v960
        %v962 = vadd.f32 %v878, %v478
        %v963 = vadd.f32 %v880, %v478
        %v964 = vmul.f32 %v906, %v962
        %v965 = vmul.f32 %v921, %v963
        %v966 = vadd.f32 %v707, %v964
        %v967 = vadd.f32 %v710, %v965
        %v968 = vtanh.pop %v966
        %v969 = vtanh.pop %v967
        %v970 = vsub.f32 %v700, %v968
        %v971 = vsub.f32 %v701, %v969
        %v972 = vmul.f32 %v946, %v970
        %v973 = vmul.f32 %v961, %v971
        %v974 = vadd.f32 %v968, %v972
        %v975 = vadd.f32 %v969, %v973
        %v976 = vpack.c.bf16 %v974, %v974
        %v977 = vpack.c.bf16 %v975, %v975
        %978 = vst [vmem:[#allocation2] sm:$0xf] %v976
        %979 = vst [vmem:[#allocation2 + $0x4] sm:$0xf] %v977
        %s980 = smul.u32 2, 3
        %s981 = smul.addr %s980, 8
        %s982 = scalar_lea.vmem [#allocation3], %s981
        %v983 = vld [vmem:[%s982] sm:$0xff]
        %v984 = vld [vmem:[%s982 + $0x8] sm:$0xff]
        %v985 = vld [vmem:[%s982 + $0x10] sm:$0xff]
        %v986 = vld [vmem:[%s982 + $0x18] sm:$0xff]
        %v987 = vld [vmem:[%s982 + $0x20] sm:$0xff]
        %v988 = vld [vmem:[%s982 + $0x28] sm:$0xff]
        %v991 = vunpack.c.l.b16 %v976
        %v992 = vunpack.c.l.b16 %v977
        %v993 = vpack.c.b16 %v992, %v991
        %995 = vmatpush.bf16.msra.mxu0 %v813
        %996 = vmatpush.bf16.msra.mxu0 %v810
        %997 = vmatpush.bf16.msra.mxu0 %v807
        %998 = vmatpush.bf16.msra.mxu0 %v804
        %999 = vmatpush.bf16.msra.mxu0 %v801
        %1000 = vmatpush.bf16.msra.mxu0 %v798
        %1001 = vmatpush.bf16.msra.mxu0 %v795
        %1002 = vmatpush.bf16.msra.mxu0 %v792
        %1003 = vmatmul.bf16.gmra.mxu0 %v993
        %v1004 = vpop.f32.mrf.mxu0
        %v1005 = vadd.f32 0.0, %v1004
        %v1006 = vpop.f32.mrf.mxu0
        %v1007 = vadd.f32 0.0, %v1006
        %1008 = vdwg.mxu0
        %1009 = vmatpush.bf16.msra.mxu0 %v814
        %1010 = vmatpush.bf16.msra.mxu0 %v811
        %1011 = vmatpush.bf16.msra.mxu0 %v808
        %1012 = vmatpush.bf16.msra.mxu0 %v805
        %1013 = vmatpush.bf16.msra.mxu0 %v802
        %1014 = vmatpush.bf16.msra.mxu0 %v799
        %1015 = vmatpush.bf16.msra.mxu0 %v796
        %1016 = vmatpush.bf16.msra.mxu0 %v793
        %1017 = vmatmul.bf16.gmra.mxu0 %v993
        %v1018 = vpop.f32.mrf.mxu0
        %v1019 = vadd.f32 0.0, %v1018
        %v1020 = vpop.f32.mrf.mxu0
        %v1021 = vadd.f32 0.0, %v1020
        %1022 = vdwg.mxu0
        %1023 = vmatpush.bf16.msra.mxu0 %v815
        %1024 = vmatpush.bf16.msra.mxu0 %v812
        %1025 = vmatpush.bf16.msra.mxu0 %v809
        %1026 = vmatpush.bf16.msra.mxu0 %v806
        %1027 = vmatpush.bf16.msra.mxu0 %v803
        %1028 = vmatpush.bf16.msra.mxu0 %v800
        %1029 = vmatpush.bf16.msra.mxu0 %v797
        %1030 = vmatpush.bf16.msra.mxu0 %v794
        %1031 = vmatmul.bf16.gmra.mxu0 %v993
        %v1032 = vpop.f32.mrf.mxu0
        %v1033 = vadd.f32 0.0, %v1032
        %v1034 = vpop.f32.mrf.mxu0
        %v1035 = vadd.f32 0.0, %v1034
        %1036 = vdwg.mxu0
        %v1037 = vadd.f32 %v983, %v1005
        %v1038 = vadd.f32 %v986, %v1007
        %v1039 = vxor.u32 %v1037, 2147483648
        %v1040 = vxor.u32 %v1038, 2147483648
        %v1041 = vmul.f32 %v1039, 1.442695
        %v1042 = vpow.pop %v1041
        %v1043 = vmul.f32 %v1040, 1.442695
        %v1044 = vpow.pop %v1043
        %v1045 = vadd.f32 %v1042, 1.0
        %v1046 = vadd.f32 %v1044, 1.0
        %v1047 = vrcp.pop %v1045
        %v1048 = vmul.f32 %v1045, %v1047
        %v1049 = vsub.f32 1.0, %v1048
        %v1050 = vmul.f32 %v1047, %v1049
        %v1051 = vadd.f32 %v1047, %v1050
        %vm1052 = vweird.f32 %v1045
        %vm1053 = vweird.f32 %v1047
        %vm1054 = vmor %vm1052, %vm1053
        %v1055 = vsel %vm1054, %v1047, %v1051
        %v1056 = vand.u32 2147483647, %v1045
        %vm1057 = vcmp.eq.f32.partialorder %v1056, 8.507059e+37
        %v1058 = vand.u32 %v1045, 2147483648
        %v1059 = vor.u32 1.1754944e-38, %v1058
        %v1060 = vsel %vm1057, %v1059, %v1055
        %v1061 = vmul.f32 1.0, %v1060
        %v1062 = vrcp.pop %v1046
        %v1063 = vmul.f32 %v1046, %v1062
        %v1064 = vsub.f32 1.0, %v1063
        %v1065 = vmul.f32 %v1062, %v1064
        %v1066 = vadd.f32 %v1062, %v1065
        %vm1067 = vweird.f32 %v1046
        %vm1068 = vweird.f32 %v1062
        %vm1069 = vmor %vm1067, %vm1068
        %v1070 = vsel %vm1069, %v1062, %v1066
        %v1071 = vand.u32 2147483647, %v1046
        %vm1072 = vcmp.eq.f32.partialorder %v1071, 8.507059e+37
        %v1073 = vand.u32 %v1046, 2147483648
        %v1074 = vor.u32 1.1754944e-38, %v1073
        %v1075 = vsel %vm1072, %v1074, %v1070
        %v1076 = vmul.f32 1.0, %v1075
        %v1077 = vadd.f32 %v984, %v1019
        %v1078 = vadd.f32 %v987, %v1021
        %v1079 = vxor.u32 %v1077, 2147483648
        %v1080 = vxor.u32 %v1078, 2147483648
        %v1081 = vmul.f32 %v1079, 1.442695
        %v1082 = vpow.pop %v1081
        %v1083 = vmul.f32 %v1080, 1.442695
        %v1084 = vpow.pop %v1083
        %v1085 = vadd.f32 %v1082, 1.0
        %v1086 = vadd.f32 %v1084, 1.0
        %v1087 = vrcp.pop %v1085
        %v1088 = vmul.f32 %v1085, %v1087
        %v1089 = vsub.f32 1.0, %v1088
        %v1090 = vmul.f32 %v1087, %v1089
        %v1091 = vadd.f32 %v1087, %v1090
        %vm1092 = vweird.f32 %v1085
        %vm1093 = vweird.f32 %v1087
        %vm1094 = vmor %vm1092, %vm1093
        %v1095 = vsel %vm1094, %v1087, %v1091
        %v1096 = vand.u32 2147483647, %v1085
        %vm1097 = vcmp.eq.f32.partialorder %v1096, 8.507059e+37
        %v1098 = vand.u32 %v1085, 2147483648
        %v1099 = vor.u32 1.1754944e-38, %v1098
        %v1100 = vsel %vm1097, %v1099, %v1095
        %v1101 = vmul.f32 1.0, %v1100
        %v1102 = vrcp.pop %v1086
        %v1103 = vmul.f32 %v1086, %v1102
        %v1104 = vsub.f32 1.0, %v1103
        %v1105 = vmul.f32 %v1102, %v1104
        %v1106 = vadd.f32 %v1102, %v1105
        %vm1107 = vweird.f32 %v1086
        %vm1108 = vweird.f32 %v1102
        %vm1109 = vmor %vm1107, %vm1108
        %v1110 = vsel %vm1109, %v1102, %v1106
        %v1111 = vand.u32 2147483647, %v1086
        %vm1112 = vcmp.eq.f32.partialorder %v1111, 8.507059e+37
        %v1113 = vand.u32 %v1086, 2147483648
        %v1114 = vor.u32 1.1754944e-38, %v1113
        %v1115 = vsel %vm1112, %v1114, %v1110
        %v1116 = vmul.f32 1.0, %v1115
        %v1117 = vadd.f32 %v1033, %v478
        %v1118 = vadd.f32 %v1035, %v478
        %v1119 = vmul.f32 %v1061, %v1117
        %v1120 = vmul.f32 %v1076, %v1118
        %v1121 = vadd.f32 %v985, %v1119
        %v1122 = vadd.f32 %v988, %v1120
        %v1123 = vtanh.pop %v1121
        %v1124 = vtanh.pop %v1122
        %v1125 = vsub.f32 %v974, %v1123
        %v1126 = vsub.f32 %v975, %v1124
        %v1127 = vmul.f32 %v1101, %v1125
        %v1128 = vmul.f32 %v1116, %v1126
        %v1129 = vadd.f32 %v1123, %v1127
        %v1130 = vadd.f32 %v1124, %v1128
        %v1131 = vpack.c.bf16 %v1129, %v1129
        %v1132 = vpack.c.bf16 %v1130, %v1130
        %s1133 = scalar_lea.vmem [#allocation2], 8
        %1134 = vst [vmem:[%s1133] sm:$0xf] %v1131
        %1135 = vst [vmem:[%s1133 + $0x4] sm:$0xf] %v1132
        %1136 = vst [vmem:[%s378] sm:$0xff] %v1129
        %1137 = vst [vmem:[%s378 + $0x8] sm:$0xff] %v1130
        %s1138 = smul.u32 2, %s27
        %p1139 = scmp.lt.s32.totalorder %s28, 1
        %s1140 = scalar_select %p1139, %s28, 1
        %p1141 = scmp.lt.s32.totalorder %s1138, 1
        %s1142 = scalar_select %p1141, %s1138, 1
        %s1143 = smul.addr %s1140, 2
        %s1144 = sadd.s32 %s1142, %s1143
        %s1145 = smul.addr %s1144, 8
        %s1146 = scalar_lea.vmem %s6, %s1145
        // Predicated region
        $region72: #{gru_net_forward.1} parent=39 // pred_check
          %p1147 = pneg %p187
        $region73: #{gru_net_forward.1} parent=39 // pred_check_branch
          %1149 = sbr.rel (%p1147) target = $region75
        $region74: #{gru_net_forward.1} parent=39 // pred_region
          %s1150 = smul.u32 2, %s27
        $region75: #{gru_net_forward.1} parent=39 // pred_fallthru
          _
      $region40: #{gru_net_forward.1} parent=5 // pred_fallthru
        _
      %p1151 = scmp.le.s32.totalorder 2, %s18
      // Predicated region
      $region76: #{gru_net_forward.1} parent=5 // pred_check
        %p1152 = pneg %p1151
      $region77: #{gru_net_forward.1} parent=5 // pred_check_branch
        %1154 = sbr.rel (%p1152) target = $region79
      $region78: #{gru_net_forward.1} parent=5 // pred_region
        %s1155 = ssub.s32 %s18, 2
        // Predicated region
        $region80: #{gru_net_forward.1} parent=78 // pred_check
          %p1156 = pneg %p193
        $region81: #{gru_net_forward.1} parent=78 // pred_check_branch
          %1158 = sbr.rel (%p1156) target = $region83
        $region82: #{gru_net_forward.1} parent=78 // pred_region
          %s1159 = smul.u32 2, %s29
          %p1160 = scmp.lt.s32.totalorder %s30, 1
          %s1161 = scalar_select %p1160, %s30, 1
          %p1162 = scmp.lt.s32.totalorder %s1159, 1
          %s1163 = scalar_select %p1162, %s1159, 1
          %s1164 = smul.addr %s1161, 2
          %s1165 = sadd.s32 %s1163, %s1164
          %s1166 = smul.addr %s1165, 8
          %s1167 = scalar_lea.vmem %s6, %s1166
        $region83: #{gru_net_forward.1} parent=78 // pred_fallthru
          _
      $region79: #{gru_net_forward.1} parent=5 // pred_fallthru
        _
    $region6: #{gru_net_forward.1} parent=1 // loop_footer
      %s22 = sadd.s32 1, %s18
    $region7: #{gru_net_forward.1} parent=1 // loop_footer_branch
      %17 = sbr.rel target = $region3
    $region8: #{gru_net_forward.1} parent=1 // loop_exit
      _
    %1168 = vsyncpa [#allocation6], 1
    %s1169 = scalar_lea.sflag [#allocation6], 1
    %1170 = vsyncpa %s1169, 1
    %1171 = vsyncpa [#allocation8], 1
    %s1172 = scalar_lea.sflag [#allocation8], 1
    %1173 = vsyncpa %s1172, 1
  %1174 = vsyncmov [#allocation4]
  %s1175 = vpop.sfrf %1174
  %p1176 = scmp.eq.s32.totalorder %s1175, 0
  %p1177 = pneg %p1176
  %1179 = shalt.err (%p1177)

</llo_original>
